<compile_context>
chip_gen: v6e
topology: v6e:2x2x1
jax: 0.10.0
libtpu: 0.0.40
codegen_flags: <defaults>
</compile_context>

<pallas_src>
import numpy as np

import jax
import jax.numpy as jnp
from jax.experimental import pallas as pl
from jax.experimental.pallas import tpu as pltpu


_MAX_OUTSTANDING_DMAS = 8  # DMA-semaphore ring depth per grid step


# --------------------------------------------------------------------------- #
# Host-side gather plan
# --------------------------------------------------------------------------- #
def _coalesce_runs(idx):
    """Coalesce consecutive-index runs.

    Returns a list of (src_tok, dst_tok, length): output tokens
    [dst_tok, dst_tok+length) are the consecutive input rows
    [src_tok, src_tok+length).
    """
    runs = []
    start = 0
    n = len(idx)
    for i in range(1, n + 1):
        if i == n or int(idx[i]) != int(idx[i - 1]) + 1:
            runs.append((int(idx[start]), int(start), int(i - start)))
            start = i
    return runs


def _split_runs(runs, n_groups):
    """Greedy balance of runs across n_groups by copied-token count."""
    groups = [[] for _ in range(n_groups)]
    loads = [0] * n_groups
    for r in runs:
        gi = int(np.argmin(loads))
        groups[gi].append(r)
        loads[gi] += r[2]
    return groups


# --------------------------------------------------------------------------- #
# Kernel: one grid step = one group of coalesced runs, each run = one
# strided HBM->HBM DMA covering all batches.
# --------------------------------------------------------------------------- #
def _build_run_copy_kernel(run_groups, nsem):
    def kernel(x_ref, o_ref, sem):
        g = pl.program_id(0)
        for gi, runs in enumerate(run_groups):
            if not runs:          # empty group -> this grid step is a no-op
                continue

            @pl.when(g == gi)
            def _copy_group(runs=runs):
                copies = []
                for i, (src, dst, ln) in enumerate(runs):
                    cp = pltpu.make_async_copy(
                        x_ref.at[:, pl.ds(src, ln), :],
                        o_ref.at[:, pl.ds(dst, ln), :],
                        sem.at[i % nsem],
                    )
                    if i >= nsem:                 # free this sem slot first
                        copies[i - nsem].wait()
                    cp.start()
                    copies.append(cp)
                for cp in copies[max(0, len(copies) - nsem):]:
                    cp.wait()

    return kernel


def _build_gather_fn(idx, B, T, D, dtype):
    """Build a jitted gather+flatten specialized to (idx, B, T, D, dtype)."""
    n_out = int(idx.shape[0])
    runs = _coalesce_runs(idx)
    n_groups = 2 if len(runs) >= 2 else 1          # v7x megacore wants >=2 steps
    run_groups = _split_runs(runs, n_groups)
    nsem = max(1, min(_MAX_OUTSTANDING_DMAS, max(len(g) for g in run_groups)))

    kernel = _build_run_copy_kernel(run_groups, nsem)

    call = pl.pallas_call(
        kernel,
        grid=(n_groups,),
        in_specs=[pl.BlockSpec(memory_space=pl.ANY)],     # raw HBM ref, no auto-DMA
        out_specs=pl.BlockSpec(memory_space=pl.ANY),      # written via DMA only
        out_shape=jax.ShapeDtypeStruct((B, n_out, D), dtype),
        scratch_shapes=[pltpu.SemaphoreType.DMA((nsem,))],
        compiler_params=pltpu.CompilerParams(
            dimension_semantics=("parallel",),
        ),
    )

    @jax.jit
    def fn(x):
        # (B, n_out, D) -> (B, n_out*D) is the same memory layout (free reshape).
        return call(x).reshape(B, n_out * D)

    return fn


# --------------------------------------------------------------------------- #
# Module equivalents
# --------------------------------------------------------------------------- #
class TokenSelector:
    """Base class for token selection operations."""

    def forward(self, X):
        raise NotImplementedError("Subclasses must implement forward method")

    def __call__(self, X):
        return self.forward(X)


class TokenRangeFlatten(TokenSelector):
    """Select a contiguous range of tokens and flatten them."""

    def __init__(self, start_idx: int, end_idx: int):
        self.start_idx = start_idx
        self.end_idx = end_idx

    def forward(self, X):
        # Contiguous range -> plain rectangular slice; a gather kernel would
        # only add per-copy overhead here.
        B = X.shape[0]
        return X[:, self.start_idx:self.end_idx, :].reshape(B, -1)


class SummaryFlatten(TokenRangeFlatten):
    """X[:, summary_idxs, :].flatten(1) via coalesced HBM->HBM DMA gather."""

    def __init__(self, summary_idxs, min_kernel_bytes: int = 32 * 1024):
        super().__init__(0, 0)
        # register_buffer equivalent: indices live host-side; the gather plan
        # is static per (T, shape, dtype) and cached.
        self.summary_idxs = np.asarray(summary_idxs, dtype=np.int64).reshape(-1)
        self.min_kernel_bytes = int(min_kernel_bytes)
        self._kernel_cache = {}

    def _normalized_idx(self, T):
        idx = self.summary_idxs.copy()
        idx = np.where(idx < 0, idx + T, idx)          # torch-style negative idx
        if idx.size and (idx.min() < 0 or idx.max() >= T):
            raise ValueError(
                f"summary_idxs out of range for sequence length {T}: {self.summary_idxs}"
            )
        return idx.astype(np.int32)

    def forward(self, X):
        B, T, D = X.shape
        idx = self._normalized_idx(T)
        n_out = int(idx.shape[0])

        if n_out == 0:
            return jnp.zeros((B, 0), dtype=X.dtype)

        # Fast path 1: fully contiguous index list -> plain slice, no kernel.
        if n_out == 1 or bool(np.all(np.diff(idx) == 1)):
            s = int(idx[0])
            return X[:, s:s + n_out, :].reshape(B, n_out * D)

        # Fast path 2: tiny gather -> plain XLA gather (launch overhead dominates).
        out_bytes = B * n_out * D * np.dtype(X.dtype).itemsize
        if out_bytes < self.min_kernel_bytes:
            return X[:, jnp.asarray(idx), :].reshape(B, n_out * D)

        # Kernel path: coalesced-run HBM->HBM DMA gather.
        key = (B, T, D, np.dtype(X.dtype).name)
        fn = self._kernel_cache.get(key)
        if fn is None:
            fn = _build_gather_fn(idx, B, T, D, X.dtype)
            self._kernel_cache[key] = fn
        return fn(X)


# --------------------------------------------------------------------------- #
# Demo / self-test
# --------------------------------------------------------------------------- #
if __name__ == "__main__":
    key = jax.random.PRNGKey(0)
    B, T, D = 4, 64, 128
    x = jax.random.normal(key, (B, T, D), dtype=jnp.float32)

    # Clustered + scattered indices (with a torch-style negative one):
    # exercises run coalescing, the 2-way run split, and the DMA sem ring.
    summary_idxs = [0, 1, 2, 3, 10, 12, 20, 21, 22, 40, -1, 33, 34, 5,
                    50, 51, 52, 53, 8, 60, 61, 17, 25, 26]
    model = SummaryFlatten(summary_idxs)

    out = jax.block_until_ready(model(x))
    assert model._kernel_cache, "expected the Pallas DMA-gather kernel path to be used"

    # pure-JAX reference of X[:, summary_idxs, :].flatten(1)
    idx_np = np.asarray(summary_idxs)
    idx_np = np.where(idx_np < 0, idx_np + T, idx_np)
    ref = x[:, jnp.asarray(idx_np), :].reshape(B, -1)
    assert out.shape == (B, len(summary_idxs) * D), out.shape
    assert out.dtype == x.dtype
    assert bool(jnp.array_equal(out, ref)), "kernel path mismatch vs reference"

    # Contiguous fast path (no kernel) -- same semantics as TokenRangeFlatten.
    contig = SummaryFlatten(list(range(7, 19)))
    out_c = jax.block_until_ready(contig(x))
    assert bool(jnp.array_equal(out_c, x[:, 7:19, :].reshape(B, -1))), "contiguous path mismatch"

    # Tiny-problem fast path (plain XLA gather).
    tiny = SummaryFlatten([3, 0, 9])
    out_t = jax.block_until_ready(tiny(x))
    ref_t = x[:, jnp.asarray([3, 0, 9]), :].reshape(B, -1)
    assert bool(jnp.array_equal(out_t, ref_t)), "tiny path mismatch"

    print("KERNEL_OK")
</pallas_src>

<mosaic_0001>
module attributes {stable_mosaic.version = 11 : i64} {
  func.func @kernel(%arg0: i32, %arg1: memref<4x64x128xf32, #tpu.memory_space<any>>, %arg2: memref<4x24x128xf32, #tpu.memory_space<any>>, %arg3: memref<7x!tpu.dma_semaphore, #tpu.memory_space<semaphore_mem>>) attributes {dimension_semantics = [#tpu.dimension_semantics<parallel>], iteration_bounds = array<i64: 2>, scalar_prefetch = 0 : i64, scratch_operands = 1 : i64, tpu.core_type = #tpu.core_type<tc>, window_params = [{}, {}]} {
    %c0_i32 = arith.constant 0 : i32
    %0 = arith.cmpi eq, %arg0, %c0_i32 : i32
    %1 = arith.extui %0 : i1 to i32
    %c0_i32_0 = arith.constant 0 : i32
    %2 = arith.cmpi ne, %1, %c0_i32_0 : i32
    scf.if %2 {
      %c0_i32_2 = arith.constant 0 : i32
      %c0_i32_3 = arith.constant 0 : i32
      %c0_i32_4 = arith.constant 0 : i32
      %c0_i32_5 = arith.constant 0 : i32
      %6 = tpu.memref_slice %arg1[%c0_i32_3, %c0_i32_4, %c0_i32_5] : memref<4x64x128xf32, #tpu.memory_space<any>> -> memref<4x4x128xf32, #tpu.memory_space<any>>
      %c0_i32_6 = arith.constant 0 : i32
      %c0_i32_7 = arith.constant 0 : i32
      %c0_i32_8 = arith.constant 0 : i32
      %7 = tpu.memref_slice %arg2[%c0_i32_6, %c0_i32_7, %c0_i32_8] : memref<4x24x128xf32, #tpu.memory_space<any>> -> memref<4x4x128xf32, #tpu.memory_space<any>>
      %8 = tpu.memref_slice %arg3[%c0_i32_2] : memref<7x!tpu.dma_semaphore, #tpu.memory_space<semaphore_mem>> -> memref<1x!tpu.dma_semaphore, #tpu.memory_space<semaphore_mem>>
      %9 = tpu.memref_squeeze %8 : memref<1x!tpu.dma_semaphore, #tpu.memory_space<semaphore_mem>> -> memref<!tpu.dma_semaphore, #tpu.memory_space<semaphore_mem>>
      tpu.enqueue_dma source(%6 : memref<4x4x128xf32, #tpu.memory_space<any>>) target(%7 : memref<4x4x128xf32, #tpu.memory_space<any>>) target_semaphore(%9 : memref<!tpu.dma_semaphore, #tpu.memory_space<semaphore_mem>>)
      %c1_i32_9 = arith.constant 1 : i32
      %c0_i32_10 = arith.constant 0 : i32
      %c40_i32 = arith.constant 40 : i32
      %c0_i32_11 = arith.constant 0 : i32
      %10 = tpu.memref_slice %arg1[%c0_i32_10, %c40_i32, %c0_i32_11] : memref<4x64x128xf32, #tpu.memory_space<any>> -> memref<4x1x128xf32, #tpu.memory_space<any>>
      %c0_i32_12 = arith.constant 0 : i32
      %c9_i32 = arith.constant 9 : i32
      %c0_i32_13 = arith.constant 0 : i32
      %11 = tpu.memref_slice %arg2[%c0_i32_12, %c9_i32, %c0_i32_13] : memref<4x24x128xf32, #tpu.memory_space<any>> -> memref<4x1x128xf32, #tpu.memory_space<any>>
      %12 = tpu.memref_slice %arg3[%c1_i32_9] : memref<7x!tpu.dma_semaphore, #tpu.memory_space<semaphore_mem>> -> memref<1x!tpu.dma_semaphore, #tpu.memory_space<semaphore_mem>>
      %13 = tpu.memref_squeeze %12 : memref<1x!tpu.dma_semaphore, #tpu.memory_space<semaphore_mem>> -> memref<!tpu.dma_semaphore, #tpu.memory_space<semaphore_mem>>
      tpu.enqueue_dma source(%10 : memref<4x1x128xf32, #tpu.memory_space<any>>) target(%11 : memref<4x1x128xf32, #tpu.memory_space<any>>) target_semaphore(%13 : memref<!tpu.dma_semaphore, #tpu.memory_space<semaphore_mem>>)
      %c2_i32 = arith.constant 2 : i32
      %c0_i32_14 = arith.constant 0 : i32
      %c63_i32 = arith.constant 63 : i32
      %c0_i32_15 = arith.constant 0 : i32
      %14 = tpu.memref_slice %arg1[%c0_i32_14, %c63_i32, %c0_i32_15] : memref<4x64x128xf32, #tpu.memory_space<any>> -> memref<4x1x128xf32, #tpu.memory_space<any>>
      %c0_i32_16 = arith.constant 0 : i32
      %c10_i32 = arith.constant 10 : i32
      %c0_i32_17 = arith.constant 0 : i32
      %15 = tpu.memref_slice %arg2[%c0_i32_16, %c10_i32, %c0_i32_17] : memref<4x24x128xf32, #tpu.memory_space<any>> -> memref<4x1x128xf32, #tpu.memory_space<any>>
      %16 = tpu.memref_slice %arg3[%c2_i32] : memref<7x!tpu.dma_semaphore, #tpu.memory_space<semaphore_mem>> -> memref<1x!tpu.dma_semaphore, #tpu.memory_space<semaphore_mem>>
      %17 = tpu.memref_squeeze %16 : memref<1x!tpu.dma_semaphore, #tpu.memory_space<semaphore_mem>> -> memref<!tpu.dma_semaphore, #tpu.memory_space<semaphore_mem>>
      tpu.enqueue_dma source(%14 : memref<4x1x128xf32, #tpu.memory_space<any>>) target(%15 : memref<4x1x128xf32, #tpu.memory_space<any>>) target_semaphore(%17 : memref<!tpu.dma_semaphore, #tpu.memory_space<semaphore_mem>>)
      %c3_i32 = arith.constant 3 : i32
      %c0_i32_18 = arith.constant 0 : i32
      %c5_i32 = arith.constant 5 : i32
      %c0_i32_19 = arith.constant 0 : i32
      %18 = tpu.memref_slice %arg1[%c0_i32_18, %c5_i32, %c0_i32_19] : memref<4x64x128xf32, #tpu.memory_space<any>> -> memref<4x1x128xf32, #tpu.memory_space<any>>
      %c0_i32_20 = arith.constant 0 : i32
      %c13_i32 = arith.constant 13 : i32
      %c0_i32_21 = arith.constant 0 : i32
      %19 = tpu.memref_slice %arg2[%c0_i32_20, %c13_i32, %c0_i32_21] : memref<4x24x128xf32, #tpu.memory_space<any>> -> memref<4x1x128xf32, #tpu.memory_space<any>>
      %20 = tpu.memref_slice %arg3[%c3_i32] : memref<7x!tpu.dma_semaphore, #tpu.memory_space<semaphore_mem>> -> memref<1x!tpu.dma_semaphore, #tpu.memory_space<semaphore_mem>>
      %21 = tpu.memref_squeeze %20 : memref<1x!tpu.dma_semaphore, #tpu.memory_space<semaphore_mem>> -> memref<!tpu.dma_semaphore, #tpu.memory_space<semaphore_mem>>
      tpu.enqueue_dma source(%18 : memref<4x1x128xf32, #tpu.memory_space<any>>) target(%19 : memref<4x1x128xf32, #tpu.memory_space<any>>) target_semaphore(%21 : memref<!tpu.dma_semaphore, #tpu.memory_space<semaphore_mem>>)
      %c4_i32 = arith.constant 4 : i32
      %c0_i32_22 = arith.constant 0 : i32
      %c50_i32 = arith.constant 50 : i32
      %c0_i32_23 = arith.constant 0 : i32
      %22 = tpu.memref_slice %arg1[%c0_i32_22, %c50_i32, %c0_i32_23] : memref<4x64x128xf32, #tpu.memory_space<any>> -> memref<4x4x128xf32, #tpu.memory_space<any>>
      %c0_i32_24 = arith.constant 0 : i32
      %c14_i32 = arith.constant 14 : i32
      %c0_i32_25 = arith.constant 0 : i32
      %23 = tpu.memref_slice %arg2[%c0_i32_24, %c14_i32, %c0_i32_25] : memref<4x24x128xf32, #tpu.memory_space<any>> -> memref<4x4x128xf32, #tpu.memory_space<any>>
      %24 = tpu.memref_slice %arg3[%c4_i32] : memref<7x!tpu.dma_semaphore, #tpu.memory_space<semaphore_mem>> -> memref<1x!tpu.dma_semaphore, #tpu.memory_space<semaphore_mem>>
      %25 = tpu.memref_squeeze %24 : memref<1x!tpu.dma_semaphore, #tpu.memory_space<semaphore_mem>> -> memref<!tpu.dma_semaphore, #tpu.memory_space<semaphore_mem>>
      tpu.enqueue_dma source(%22 : memref<4x4x128xf32, #tpu.memory_space<any>>) target(%23 : memref<4x4x128xf32, #tpu.memory_space<any>>) target_semaphore(%25 : memref<!tpu.dma_semaphore, #tpu.memory_space<semaphore_mem>>)
      %c5_i32_26 = arith.constant 5 : i32
      %c0_i32_27 = arith.constant 0 : i32
      %c25_i32 = arith.constant 25 : i32
      %c0_i32_28 = arith.constant 0 : i32
      %26 = tpu.memref_slice %arg1[%c0_i32_27, %c25_i32, %c0_i32_28] : memref<4x64x128xf32, #tpu.memory_space<any>> -> memref<4x2x128xf32, #tpu.memory_space<any>>
      %c0_i32_29 = arith.constant 0 : i32
      %c22_i32 = arith.constant 22 : i32
      %c0_i32_30 = arith.constant 0 : i32
      %27 = tpu.memref_slice %arg2[%c0_i32_29, %c22_i32, %c0_i32_30] : memref<4x24x128xf32, #tpu.memory_space<any>> -> memref<4x2x128xf32, #tpu.memory_space<any>>
      %28 = tpu.memref_slice %arg3[%c5_i32_26] : memref<7x!tpu.dma_semaphore, #tpu.memory_space<semaphore_mem>> -> memref<1x!tpu.dma_semaphore, #tpu.memory_space<semaphore_mem>>
      %29 = tpu.memref_squeeze %28 : memref<1x!tpu.dma_semaphore, #tpu.memory_space<semaphore_mem>> -> memref<!tpu.dma_semaphore, #tpu.memory_space<semaphore_mem>>
      tpu.enqueue_dma source(%26 : memref<4x2x128xf32, #tpu.memory_space<any>>) target(%27 : memref<4x2x128xf32, #tpu.memory_space<any>>) target_semaphore(%29 : memref<!tpu.dma_semaphore, #tpu.memory_space<semaphore_mem>>)
      %c0_i32_31 = arith.constant 0 : i32
      %c0_i32_32 = arith.constant 0 : i32
      %c0_i32_33 = arith.constant 0 : i32
      %c0_i32_34 = arith.constant 0 : i32
      %30 = tpu.memref_slice %arg1[%c0_i32_32, %c0_i32_33, %c0_i32_34] : memref<4x64x128xf32, #tpu.memory_space<any>> -> memref<4x4x128xf32, #tpu.memory_space<any>>
      %c0_i32_35 = arith.constant 0 : i32
      %c0_i32_36 = arith.constant 0 : i32
      %c0_i32_37 = arith.constant 0 : i32
      %31 = tpu.memref_slice %arg2[%c0_i32_35, %c0_i32_36, %c0_i32_37] : memref<4x24x128xf32, #tpu.memory_space<any>> -> memref<4x4x128xf32, #tpu.memory_space<any>>
      %32 = tpu.memref_slice %arg3[%c0_i32_31] : memref<7x!tpu.dma_semaphore, #tpu.memory_space<semaphore_mem>> -> memref<1x!tpu.dma_semaphore, #tpu.memory_space<semaphore_mem>>
      %33 = tpu.memref_squeeze %32 : memref<1x!tpu.dma_semaphore, #tpu.memory_space<semaphore_mem>> -> memref<!tpu.dma_semaphore, #tpu.memory_space<semaphore_mem>>
      tpu.wait_dma2 semaphore(%33 : memref<!tpu.dma_semaphore, #tpu.memory_space<semaphore_mem>>) src(%30 : memref<4x4x128xf32, #tpu.memory_space<any>>) dst(%31 : memref<4x4x128xf32, #tpu.memory_space<any>>)
      %c1_i32_38 = arith.constant 1 : i32
      %c0_i32_39 = arith.constant 0 : i32
      %c40_i32_40 = arith.constant 40 : i32
      %c0_i32_41 = arith.constant 0 : i32
      %34 = tpu.memref_slice %arg1[%c0_i32_39, %c40_i32_40, %c0_i32_41] : memref<4x64x128xf32, #tpu.memory_space<any>> -> memref<4x1x128xf32, #tpu.memory_space<any>>
      %c0_i32_42 = arith.constant 0 : i32
      %c9_i32_43 = arith.constant 9 : i32
      %c0_i32_44 = arith.constant 0 : i32
      %35 = tpu.memref_slice %arg2[%c0_i32_42, %c9_i32_43, %c0_i32_44] : memref<4x24x128xf32, #tpu.memory_space<any>> -> memref<4x1x128xf32, #tpu.memory_space<any>>
      %36 = tpu.memref_slice %arg3[%c1_i32_38] : memref<7x!tpu.dma_semaphore, #tpu.memory_space<semaphore_mem>> -> memref<1x!tpu.dma_semaphore, #tpu.memory_space<semaphore_mem>>
      %37 = tpu.memref_squeeze %36 : memref<1x!tpu.dma_semaphore, #tpu.memory_space<semaphore_mem>> -> memref<!tpu.dma_semaphore, #tpu.memory_space<semaphore_mem>>
      tpu.wait_dma2 semaphore(%37 : memref<!tpu.dma_semaphore, #tpu.memory_space<semaphore_mem>>) src(%34 : memref<4x1x128xf32, #tpu.memory_space<any>>) dst(%35 : memref<4x1x128xf32, #tpu.memory_space<any>>)
      %c2_i32_45 = arith.constant 2 : i32
      %c0_i32_46 = arith.constant 0 : i32
      %c63_i32_47 = arith.constant 63 : i32
      %c0_i32_48 = arith.constant 0 : i32
      %38 = tpu.memref_slice %arg1[%c0_i32_46, %c63_i32_47, %c0_i32_48] : memref<4x64x128xf32, #tpu.memory_space<any>> -> memref<4x1x128xf32, #tpu.memory_space<any>>
      %c0_i32_49 = arith.constant 0 : i32
      %c10_i32_50 = arith.constant 10 : i32
      %c0_i32_51 = arith.constant 0 : i32
      %39 = tpu.memref_slice %arg2[%c0_i32_49, %c10_i32_50, %c0_i32_51] : memref<4x24x128xf32, #tpu.memory_space<any>> -> memref<4x1x128xf32, #tpu.memory_space<any>>
      %40 = tpu.memref_slice %arg3[%c2_i32_45] : memref<7x!tpu.dma_semaphore, #tpu.memory_space<semaphore_mem>> -> memref<1x!tpu.dma_semaphore, #tpu.memory_space<semaphore_mem>>
      %41 = tpu.memref_squeeze %40 : memref<1x!tpu.dma_semaphore, #tpu.memory_space<semaphore_mem>> -> memref<!tpu.dma_semaphore, #tpu.memory_space<semaphore_mem>>
      tpu.wait_dma2 semaphore(%41 : memref<!tpu.dma_semaphore, #tpu.memory_space<semaphore_mem>>) src(%38 : memref<4x1x128xf32, #tpu.memory_space<any>>) dst(%39 : memref<4x1x128xf32, #tpu.memory_space<any>>)
      %c3_i32_52 = arith.constant 3 : i32
      %c0_i32_53 = arith.constant 0 : i32
      %c5_i32_54 = arith.constant 5 : i32
      %c0_i32_55 = arith.constant 0 : i32
      %42 = tpu.memref_slice %arg1[%c0_i32_53, %c5_i32_54, %c0_i32_55] : memref<4x64x128xf32, #tpu.memory_space<any>> -> memref<4x1x128xf32, #tpu.memory_space<any>>
      %c0_i32_56 = arith.constant 0 : i32
      %c13_i32_57 = arith.constant 13 : i32
      %c0_i32_58 = arith.constant 0 : i32
      %43 = tpu.memref_slice %arg2[%c0_i32_56, %c13_i32_57, %c0_i32_58] : memref<4x24x128xf32, #tpu.memory_space<any>> -> memref<4x1x128xf32, #tpu.memory_space<any>>
      %44 = tpu.memref_slice %arg3[%c3_i32_52] : memref<7x!tpu.dma_semaphore, #tpu.memory_space<semaphore_mem>> -> memref<1x!tpu.dma_semaphore, #tpu.memory_space<semaphore_mem>>
      %45 = tpu.memref_squeeze %44 : memref<1x!tpu.dma_semaphore, #tpu.memory_space<semaphore_mem>> -> memref<!tpu.dma_semaphore, #tpu.memory_space<semaphore_mem>>
      tpu.wait_dma2 semaphore(%45 : memref<!tpu.dma_semaphore, #tpu.memory_space<semaphore_mem>>) src(%42 : memref<4x1x128xf32, #tpu.memory_space<any>>) dst(%43 : memref<4x1x128xf32, #tpu.memory_space<any>>)
      %c4_i32_59 = arith.constant 4 : i32
      %c0_i32_60 = arith.constant 0 : i32
      %c50_i32_61 = arith.constant 50 : i32
      %c0_i32_62 = arith.constant 0 : i32
      %46 = tpu.memref_slice %arg1[%c0_i32_60, %c50_i32_61, %c0_i32_62] : memref<4x64x128xf32, #tpu.memory_space<any>> -> memref<4x4x128xf32, #tpu.memory_space<any>>
      %c0_i32_63 = arith.constant 0 : i32
      %c14_i32_64 = arith.constant 14 : i32
      %c0_i32_65 = arith.constant 0 : i32
      %47 = tpu.memref_slice %arg2[%c0_i32_63, %c14_i32_64, %c0_i32_65] : memref<4x24x128xf32, #tpu.memory_space<any>> -> memref<4x4x128xf32, #tpu.memory_space<any>>
      %48 = tpu.memref_slice %arg3[%c4_i32_59] : memref<7x!tpu.dma_semaphore, #tpu.memory_space<semaphore_mem>> -> memref<1x!tpu.dma_semaphore, #tpu.memory_space<semaphore_mem>>
      %49 = tpu.memref_squeeze %48 : memref<1x!tpu.dma_semaphore, #tpu.memory_space<semaphore_mem>> -> memref<!tpu.dma_semaphore, #tpu.memory_space<semaphore_mem>>
      tpu.wait_dma2 semaphore(%49 : memref<!tpu.dma_semaphore, #tpu.memory_space<semaphore_mem>>) src(%46 : memref<4x4x128xf32, #tpu.memory_space<any>>) dst(%47 : memref<4x4x128xf32, #tpu.memory_space<any>>)
      %c5_i32_66 = arith.constant 5 : i32
      %c0_i32_67 = arith.constant 0 : i32
      %c25_i32_68 = arith.constant 25 : i32
      %c0_i32_69 = arith.constant 0 : i32
      %50 = tpu.memref_slice %arg1[%c0_i32_67, %c25_i32_68, %c0_i32_69] : memref<4x64x128xf32, #tpu.memory_space<any>> -> memref<4x2x128xf32, #tpu.memory_space<any>>
      %c0_i32_70 = arith.constant 0 : i32
      %c22_i32_71 = arith.constant 22 : i32
      %c0_i32_72 = arith.constant 0 : i32
      %51 = tpu.memref_slice %arg2[%c0_i32_70, %c22_i32_71, %c0_i32_72] : memref<4x24x128xf32, #tpu.memory_space<any>> -> memref<4x2x128xf32, #tpu.memory_space<any>>
      %52 = tpu.memref_slice %arg3[%c5_i32_66] : memref<7x!tpu.dma_semaphore, #tpu.memory_space<semaphore_mem>> -> memref<1x!tpu.dma_semaphore, #tpu.memory_space<semaphore_mem>>
      %53 = tpu.memref_squeeze %52 : memref<1x!tpu.dma_semaphore, #tpu.memory_space<semaphore_mem>> -> memref<!tpu.dma_semaphore, #tpu.memory_space<semaphore_mem>>
      tpu.wait_dma2 semaphore(%53 : memref<!tpu.dma_semaphore, #tpu.memory_space<semaphore_mem>>) src(%50 : memref<4x2x128xf32, #tpu.memory_space<any>>) dst(%51 : memref<4x2x128xf32, #tpu.memory_space<any>>)
    } else {
    }
    %c1_i32 = arith.constant 1 : i32
    %3 = arith.cmpi eq, %arg0, %c1_i32 : i32
    %4 = arith.extui %3 : i1 to i32
    %c0_i32_1 = arith.constant 0 : i32
    %5 = arith.cmpi ne, %4, %c0_i32_1 : i32
    scf.if %5 {
      %c0_i32_2 = arith.constant 0 : i32
      %c0_i32_3 = arith.constant 0 : i32
      %c10_i32 = arith.constant 10 : i32
      %c0_i32_4 = arith.constant 0 : i32
      %6 = tpu.memref_slice %arg1[%c0_i32_3, %c10_i32, %c0_i32_4] : memref<4x64x128xf32, #tpu.memory_space<any>> -> memref<4x1x128xf32, #tpu.memory_space<any>>
      %c0_i32_5 = arith.constant 0 : i32
      %c4_i32 = arith.constant 4 : i32
      %c0_i32_6 = arith.constant 0 : i32
      %7 = tpu.memref_slice %arg2[%c0_i32_5, %c4_i32, %c0_i32_6] : memref<4x24x128xf32, #tpu.memory_space<any>> -> memref<4x1x128xf32, #tpu.memory_space<any>>
      %8 = tpu.memref_slice %arg3[%c0_i32_2] : memref<7x!tpu.dma_semaphore, #tpu.memory_space<semaphore_mem>> -> memref<1x!tpu.dma_semaphore, #tpu.memory_space<semaphore_mem>>
      %9 = tpu.memref_squeeze %8 : memref<1x!tpu.dma_semaphore, #tpu.memory_space<semaphore_mem>> -> memref<!tpu.dma_semaphore, #tpu.memory_space<semaphore_mem>>
      tpu.enqueue_dma source(%6 : memref<4x1x128xf32, #tpu.memory_space<any>>) target(%7 : memref<4x1x128xf32, #tpu.memory_space<any>>) target_semaphore(%9 : memref<!tpu.dma_semaphore, #tpu.memory_space<semaphore_mem>>)
      %c1_i32_7 = arith.constant 1 : i32
      %c0_i32_8 = arith.constant 0 : i32
      %c12_i32 = arith.constant 12 : i32
      %c0_i32_9 = arith.constant 0 : i32
      %10 = tpu.memref_slice %arg1[%c0_i32_8, %c12_i32, %c0_i32_9] : memref<4x64x128xf32, #tpu.memory_space<any>> -> memref<4x1x128xf32, #tpu.memory_space<any>>
      %c0_i32_10 = arith.constant 0 : i32
      %c5_i32 = arith.constant 5 : i32
      %c0_i32_11 = arith.constant 0 : i32
      %11 = tpu.memref_slice %arg2[%c0_i32_10, %c5_i32, %c0_i32_11] : memref<4x24x128xf32, #tpu.memory_space<any>> -> memref<4x1x128xf32, #tpu.memory_space<any>>
      %12 = tpu.memref_slice %arg3[%c1_i32_7] : memref<7x!tpu.dma_semaphore, #tpu.memory_space<semaphore_mem>> -> memref<1x!tpu.dma_semaphore, #tpu.memory_space<semaphore_mem>>
      %13 = tpu.memref_squeeze %12 : memref<1x!tpu.dma_semaphore, #tpu.memory_space<semaphore_mem>> -> memref<!tpu.dma_semaphore, #tpu.memory_space<semaphore_mem>>
      tpu.enqueue_dma source(%10 : memref<4x1x128xf32, #tpu.memory_space<any>>) target(%11 : memref<4x1x128xf32, #tpu.memory_space<any>>) target_semaphore(%13 : memref<!tpu.dma_semaphore, #tpu.memory_space<semaphore_mem>>)
      %c2_i32 = arith.constant 2 : i32
      %c0_i32_12 = arith.constant 0 : i32
      %c20_i32 = arith.constant 20 : i32
      %c0_i32_13 = arith.constant 0 : i32
      %14 = tpu.memref_slice %arg1[%c0_i32_12, %c20_i32, %c0_i32_13] : memref<4x64x128xf32, #tpu.memory_space<any>> -> memref<4x3x128xf32, #tpu.memory_space<any>>
      %c0_i32_14 = arith.constant 0 : i32
      %c6_i32 = arith.constant 6 : i32
      %c0_i32_15 = arith.constant 0 : i32
      %15 = tpu.memref_slice %arg2[%c0_i32_14, %c6_i32, %c0_i32_15] : memref<4x24x128xf32, #tpu.memory_space<any>> -> memref<4x3x128xf32, #tpu.memory_space<any>>
      %16 = tpu.memref_slice %arg3[%c2_i32] : memref<7x!tpu.dma_semaphore, #tpu.memory_space<semaphore_mem>> -> memref<1x!tpu.dma_semaphore, #tpu.memory_space<semaphore_mem>>
      %17 = tpu.memref_squeeze %16 : memref<1x!tpu.dma_semaphore, #tpu.memory_space<semaphore_mem>> -> memref<!tpu.dma_semaphore, #tpu.memory_space<semaphore_mem>>
      tpu.enqueue_dma source(%14 : memref<4x3x128xf32, #tpu.memory_space<any>>) target(%15 : memref<4x3x128xf32, #tpu.memory_space<any>>) target_semaphore(%17 : memref<!tpu.dma_semaphore, #tpu.memory_space<semaphore_mem>>)
      %c3_i32 = arith.constant 3 : i32
      %c0_i32_16 = arith.constant 0 : i32
      %c33_i32 = arith.constant 33 : i32
      %c0_i32_17 = arith.constant 0 : i32
      %18 = tpu.memref_slice %arg1[%c0_i32_16, %c33_i32, %c0_i32_17] : memref<4x64x128xf32, #tpu.memory_space<any>> -> memref<4x2x128xf32, #tpu.memory_space<any>>
      %c0_i32_18 = arith.constant 0 : i32
      %c11_i32 = arith.constant 11 : i32
      %c0_i32_19 = arith.constant 0 : i32
      %19 = tpu.memref_slice %arg2[%c0_i32_18, %c11_i32, %c0_i32_19] : memref<4x24x128xf32, #tpu.memory_space<any>> -> memref<4x2x128xf32, #tpu.memory_space<any>>
      %20 = tpu.memref_slice %arg3[%c3_i32] : memref<7x!tpu.dma_semaphore, #tpu.memory_space<semaphore_mem>> -> memref<1x!tpu.dma_semaphore, #tpu.memory_space<semaphore_mem>>
      %21 = tpu.memref_squeeze %20 : memref<1x!tpu.dma_semaphore, #tpu.memory_space<semaphore_mem>> -> memref<!tpu.dma_semaphore, #tpu.memory_space<semaphore_mem>>
      tpu.enqueue_dma source(%18 : memref<4x2x128xf32, #tpu.memory_space<any>>) target(%19 : memref<4x2x128xf32, #tpu.memory_space<any>>) target_semaphore(%21 : memref<!tpu.dma_semaphore, #tpu.memory_space<semaphore_mem>>)
      %c4_i32_20 = arith.constant 4 : i32
      %c0_i32_21 = arith.constant 0 : i32
      %c8_i32 = arith.constant 8 : i32
      %c0_i32_22 = arith.constant 0 : i32
      %22 = tpu.memref_slice %arg1[%c0_i32_21, %c8_i32, %c0_i32_22] : memref<4x64x128xf32, #tpu.memory_space<any>> -> memref<4x1x128xf32, #tpu.memory_space<any>>
      %c0_i32_23 = arith.constant 0 : i32
      %c18_i32 = arith.constant 18 : i32
      %c0_i32_24 = arith.constant 0 : i32
      %23 = tpu.memref_slice %arg2[%c0_i32_23, %c18_i32, %c0_i32_24] : memref<4x24x128xf32, #tpu.memory_space<any>> -> memref<4x1x128xf32, #tpu.memory_space<any>>
      %24 = tpu.memref_slice %arg3[%c4_i32_20] : memref<7x!tpu.dma_semaphore, #tpu.memory_space<semaphore_mem>> -> memref<1x!tpu.dma_semaphore, #tpu.memory_space<semaphore_mem>>
      %25 = tpu.memref_squeeze %24 : memref<1x!tpu.dma_semaphore, #tpu.memory_space<semaphore_mem>> -> memref<!tpu.dma_semaphore, #tpu.memory_space<semaphore_mem>>
      tpu.enqueue_dma source(%22 : memref<4x1x128xf32, #tpu.memory_space<any>>) target(%23 : memref<4x1x128xf32, #tpu.memory_space<any>>) target_semaphore(%25 : memref<!tpu.dma_semaphore, #tpu.memory_space<semaphore_mem>>)
      %c5_i32_25 = arith.constant 5 : i32
      %c0_i32_26 = arith.constant 0 : i32
      %c60_i32 = arith.constant 60 : i32
      %c0_i32_27 = arith.constant 0 : i32
      %26 = tpu.memref_slice %arg1[%c0_i32_26, %c60_i32, %c0_i32_27] : memref<4x64x128xf32, #tpu.memory_space<any>> -> memref<4x2x128xf32, #tpu.memory_space<any>>
      %c0_i32_28 = arith.constant 0 : i32
      %c19_i32 = arith.constant 19 : i32
      %c0_i32_29 = arith.constant 0 : i32
      %27 = tpu.memref_slice %arg2[%c0_i32_28, %c19_i32, %c0_i32_29] : memref<4x24x128xf32, #tpu.memory_space<any>> -> memref<4x2x128xf32, #tpu.memory_space<any>>
      %28 = tpu.memref_slice %arg3[%c5_i32_25] : memref<7x!tpu.dma_semaphore, #tpu.memory_space<semaphore_mem>> -> memref<1x!tpu.dma_semaphore, #tpu.memory_space<semaphore_mem>>
      %29 = tpu.memref_squeeze %28 : memref<1x!tpu.dma_semaphore, #tpu.memory_space<semaphore_mem>> -> memref<!tpu.dma_semaphore, #tpu.memory_space<semaphore_mem>>
      tpu.enqueue_dma source(%26 : memref<4x2x128xf32, #tpu.memory_space<any>>) target(%27 : memref<4x2x128xf32, #tpu.memory_space<any>>) target_semaphore(%29 : memref<!tpu.dma_semaphore, #tpu.memory_space<semaphore_mem>>)
      %c6_i32_30 = arith.constant 6 : i32
      %c0_i32_31 = arith.constant 0 : i32
      %c17_i32 = arith.constant 17 : i32
      %c0_i32_32 = arith.constant 0 : i32
      %30 = tpu.memref_slice %arg1[%c0_i32_31, %c17_i32, %c0_i32_32] : memref<4x64x128xf32, #tpu.memory_space<any>> -> memref<4x1x128xf32, #tpu.memory_space<any>>
      %c0_i32_33 = arith.constant 0 : i32
      %c21_i32 = arith.constant 21 : i32
      %c0_i32_34 = arith.constant 0 : i32
      %31 = tpu.memref_slice %arg2[%c0_i32_33, %c21_i32, %c0_i32_34] : memref<4x24x128xf32, #tpu.memory_space<any>> -> memref<4x1x128xf32, #tpu.memory_space<any>>
      %32 = tpu.memref_slice %arg3[%c6_i32_30] : memref<7x!tpu.dma_semaphore, #tpu.memory_space<semaphore_mem>> -> memref<1x!tpu.dma_semaphore, #tpu.memory_space<semaphore_mem>>
      %33 = tpu.memref_squeeze %32 : memref<1x!tpu.dma_semaphore, #tpu.memory_space<semaphore_mem>> -> memref<!tpu.dma_semaphore, #tpu.memory_space<semaphore_mem>>
      tpu.enqueue_dma source(%30 : memref<4x1x128xf32, #tpu.memory_space<any>>) target(%31 : memref<4x1x128xf32, #tpu.memory_space<any>>) target_semaphore(%33 : memref<!tpu.dma_semaphore, #tpu.memory_space<semaphore_mem>>)
      %c0_i32_35 = arith.constant 0 : i32
      %c0_i32_36 = arith.constant 0 : i32
      %c10_i32_37 = arith.constant 10 : i32
      %c0_i32_38 = arith.constant 0 : i32
      %34 = tpu.memref_slice %arg1[%c0_i32_36, %c10_i32_37, %c0_i32_38] : memref<4x64x128xf32, #tpu.memory_space<any>> -> memref<4x1x128xf32, #tpu.memory_space<any>>
      %c0_i32_39 = arith.constant 0 : i32
      %c4_i32_40 = arith.constant 4 : i32
      %c0_i32_41 = arith.constant 0 : i32
      %35 = tpu.memref_slice %arg2[%c0_i32_39, %c4_i32_40, %c0_i32_41] : memref<4x24x128xf32, #tpu.memory_space<any>> -> memref<4x1x128xf32, #tpu.memory_space<any>>
      %36 = tpu.memref_slice %arg3[%c0_i32_35] : memref<7x!tpu.dma_semaphore, #tpu.memory_space<semaphore_mem>> -> memref<1x!tpu.dma_semaphore, #tpu.memory_space<semaphore_mem>>
      %37 = tpu.memref_squeeze %36 : memref<1x!tpu.dma_semaphore, #tpu.memory_space<semaphore_mem>> -> memref<!tpu.dma_semaphore, #tpu.memory_space<semaphore_mem>>
      tpu.wait_dma2 semaphore(%37 : memref<!tpu.dma_semaphore, #tpu.memory_space<semaphore_mem>>) src(%34 : memref<4x1x128xf32, #tpu.memory_space<any>>) dst(%35 : memref<4x1x128xf32, #tpu.memory_space<any>>)
      %c1_i32_42 = arith.constant 1 : i32
      %c0_i32_43 = arith.constant 0 : i32
      %c12_i32_44 = arith.constant 12 : i32
      %c0_i32_45 = arith.constant 0 : i32
      %38 = tpu.memref_slice %arg1[%c0_i32_43, %c12_i32_44, %c0_i32_45] : memref<4x64x128xf32, #tpu.memory_space<any>> -> memref<4x1x128xf32, #tpu.memory_space<any>>
      %c0_i32_46 = arith.constant 0 : i32
      %c5_i32_47 = arith.constant 5 : i32
      %c0_i32_48 = arith.constant 0 : i32
      %39 = tpu.memref_slice %arg2[%c0_i32_46, %c5_i32_47, %c0_i32_48] : memref<4x24x128xf32, #tpu.memory_space<any>> -> memref<4x1x128xf32, #tpu.memory_space<any>>
      %40 = tpu.memref_slice %arg3[%c1_i32_42] : memref<7x!tpu.dma_semaphore, #tpu.memory_space<semaphore_mem>> -> memref<1x!tpu.dma_semaphore, #tpu.memory_space<semaphore_mem>>
      %41 = tpu.memref_squeeze %40 : memref<1x!tpu.dma_semaphore, #tpu.memory_space<semaphore_mem>> -> memref<!tpu.dma_semaphore, #tpu.memory_space<semaphore_mem>>
      tpu.wait_dma2 semaphore(%41 : memref<!tpu.dma_semaphore, #tpu.memory_space<semaphore_mem>>) src(%38 : memref<4x1x128xf32, #tpu.memory_space<any>>) dst(%39 : memref<4x1x128xf32, #tpu.memory_space<any>>)
      %c2_i32_49 = arith.constant 2 : i32
      %c0_i32_50 = arith.constant 0 : i32
      %c20_i32_51 = arith.constant 20 : i32
      %c0_i32_52 = arith.constant 0 : i32
      %42 = tpu.memref_slice %arg1[%c0_i32_50, %c20_i32_51, %c0_i32_52] : memref<4x64x128xf32, #tpu.memory_space<any>> -> memref<4x3x128xf32, #tpu.memory_space<any>>
      %c0_i32_53 = arith.constant 0 : i32
      %c6_i32_54 = arith.constant 6 : i32
      %c0_i32_55 = arith.constant 0 : i32
      %43 = tpu.memref_slice %arg2[%c0_i32_53, %c6_i32_54, %c0_i32_55] : memref<4x24x128xf32, #tpu.memory_space<any>> -> memref<4x3x128xf32, #tpu.memory_space<any>>
      %44 = tpu.memref_slice %arg3[%c2_i32_49] : memref<7x!tpu.dma_semaphore, #tpu.memory_space<semaphore_mem>> -> memref<1x!tpu.dma_semaphore, #tpu.memory_space<semaphore_mem>>
      %45 = tpu.memref_squeeze %44 : memref<1x!tpu.dma_semaphore, #tpu.memory_space<semaphore_mem>> -> memref<!tpu.dma_semaphore, #tpu.memory_space<semaphore_mem>>
      tpu.wait_dma2 semaphore(%45 : memref<!tpu.dma_semaphore, #tpu.memory_space<semaphore_mem>>) src(%42 : memref<4x3x128xf32, #tpu.memory_space<any>>) dst(%43 : memref<4x3x128xf32, #tpu.memory_space<any>>)
      %c3_i32_56 = arith.constant 3 : i32
      %c0_i32_57 = arith.constant 0 : i32
      %c33_i32_58 = arith.constant 33 : i32
      %c0_i32_59 = arith.constant 0 : i32
      %46 = tpu.memref_slice %arg1[%c0_i32_57, %c33_i32_58, %c0_i32_59] : memref<4x64x128xf32, #tpu.memory_space<any>> -> memref<4x2x128xf32, #tpu.memory_space<any>>
      %c0_i32_60 = arith.constant 0 : i32
      %c11_i32_61 = arith.constant 11 : i32
      %c0_i32_62 = arith.constant 0 : i32
      %47 = tpu.memref_slice %arg2[%c0_i32_60, %c11_i32_61, %c0_i32_62] : memref<4x24x128xf32, #tpu.memory_space<any>> -> memref<4x2x128xf32, #tpu.memory_space<any>>
      %48 = tpu.memref_slice %arg3[%c3_i32_56] : memref<7x!tpu.dma_semaphore, #tpu.memory_space<semaphore_mem>> -> memref<1x!tpu.dma_semaphore, #tpu.memory_space<semaphore_mem>>
      %49 = tpu.memref_squeeze %48 : memref<1x!tpu.dma_semaphore, #tpu.memory_space<semaphore_mem>> -> memref<!tpu.dma_semaphore, #tpu.memory_space<semaphore_mem>>
      tpu.wait_dma2 semaphore(%49 : memref<!tpu.dma_semaphore, #tpu.memory_space<semaphore_mem>>) src(%46 : memref<4x2x128xf32, #tpu.memory_space<any>>) dst(%47 : memref<4x2x128xf32, #tpu.memory_space<any>>)
      %c4_i32_63 = arith.constant 4 : i32
      %c0_i32_64 = arith.constant 0 : i32
      %c8_i32_65 = arith.constant 8 : i32
      %c0_i32_66 = arith.constant 0 : i32
      %50 = tpu.memref_slice %arg1[%c0_i32_64, %c8_i32_65, %c0_i32_66] : memref<4x64x128xf32, #tpu.memory_space<any>> -> memref<4x1x128xf32, #tpu.memory_space<any>>
      %c0_i32_67 = arith.constant 0 : i32
      %c18_i32_68 = arith.constant 18 : i32
      %c0_i32_69 = arith.constant 0 : i32
      %51 = tpu.memref_slice %arg2[%c0_i32_67, %c18_i32_68, %c0_i32_69] : memref<4x24x128xf32, #tpu.memory_space<any>> -> memref<4x1x128xf32, #tpu.memory_space<any>>
      %52 = tpu.memref_slice %arg3[%c4_i32_63] : memref<7x!tpu.dma_semaphore, #tpu.memory_space<semaphore_mem>> -> memref<1x!tpu.dma_semaphore, #tpu.memory_space<semaphore_mem>>
      %53 = tpu.memref_squeeze %52 : memref<1x!tpu.dma_semaphore, #tpu.memory_space<semaphore_mem>> -> memref<!tpu.dma_semaphore, #tpu.memory_space<semaphore_mem>>
      tpu.wait_dma2 semaphore(%53 : memref<!tpu.dma_semaphore, #tpu.memory_space<semaphore_mem>>) src(%50 : memref<4x1x128xf32, #tpu.memory_space<any>>) dst(%51 : memref<4x1x128xf32, #tpu.memory_space<any>>)
      %c5_i32_70 = arith.constant 5 : i32
      %c0_i32_71 = arith.constant 0 : i32
      %c60_i32_72 = arith.constant 60 : i32
      %c0_i32_73 = arith.constant 0 : i32
      %54 = tpu.memref_slice %arg1[%c0_i32_71, %c60_i32_72, %c0_i32_73] : memref<4x64x128xf32, #tpu.memory_space<any>> -> memref<4x2x128xf32, #tpu.memory_space<any>>
      %c0_i32_74 = arith.constant 0 : i32
      %c19_i32_75 = arith.constant 19 : i32
      %c0_i32_76 = arith.constant 0 : i32
      %55 = tpu.memref_slice %arg2[%c0_i32_74, %c19_i32_75, %c0_i32_76] : memref<4x24x128xf32, #tpu.memory_space<any>> -> memref<4x2x128xf32, #tpu.memory_space<any>>
      %56 = tpu.memref_slice %arg3[%c5_i32_70] : memref<7x!tpu.dma_semaphore, #tpu.memory_space<semaphore_mem>> -> memref<1x!tpu.dma_semaphore, #tpu.memory_space<semaphore_mem>>
      %57 = tpu.memref_squeeze %56 : memref<1x!tpu.dma_semaphore, #tpu.memory_space<semaphore_mem>> -> memref<!tpu.dma_semaphore, #tpu.memory_space<semaphore_mem>>
      tpu.wait_dma2 semaphore(%57 : memref<!tpu.dma_semaphore, #tpu.memory_space<semaphore_mem>>) src(%54 : memref<4x2x128xf32, #tpu.memory_space<any>>) dst(%55 : memref<4x2x128xf32, #tpu.memory_space<any>>)
      %c6_i32_77 = arith.constant 6 : i32
      %c0_i32_78 = arith.constant 0 : i32
      %c17_i32_79 = arith.constant 17 : i32
      %c0_i32_80 = arith.constant 0 : i32
      %58 = tpu.memref_slice %arg1[%c0_i32_78, %c17_i32_79, %c0_i32_80] : memref<4x64x128xf32, #tpu.memory_space<any>> -> memref<4x1x128xf32, #tpu.memory_space<any>>
      %c0_i32_81 = arith.constant 0 : i32
      %c21_i32_82 = arith.constant 21 : i32
      %c0_i32_83 = arith.constant 0 : i32
      %59 = tpu.memref_slice %arg2[%c0_i32_81, %c21_i32_82, %c0_i32_83] : memref<4x24x128xf32, #tpu.memory_space<any>> -> memref<4x1x128xf32, #tpu.memory_space<any>>
      %60 = tpu.memref_slice %arg3[%c6_i32_77] : memref<7x!tpu.dma_semaphore, #tpu.memory_space<semaphore_mem>> -> memref<1x!tpu.dma_semaphore, #tpu.memory_space<semaphore_mem>>
      %61 = tpu.memref_squeeze %60 : memref<1x!tpu.dma_semaphore, #tpu.memory_space<semaphore_mem>> -> memref<!tpu.dma_semaphore, #tpu.memory_space<semaphore_mem>>
      tpu.wait_dma2 semaphore(%61 : memref<!tpu.dma_semaphore, #tpu.memory_space<semaphore_mem>>) src(%58 : memref<4x1x128xf32, #tpu.memory_space<any>>) dst(%59 : memref<4x1x128xf32, #tpu.memory_space<any>>)
    } else {
    }
    return
  }
}

</mosaic_0001>

<llo_original>
// kernel: fn.1
$region0: #{fn.1}
  #allocation0 [shape = 'u32[]', space=smem, size = 0x4, offset = 0x4, fixed_abs, tag = 'smem constant byte address 0x4 - core index']
  #allocation1 [shape = 'u32[144,128]{1,0:T(1,128)}', space=vmem, size = 0x12000, scoped, tag = 'internal scratch']
  #allocation2 [shape = 's32[7]{0}', space=sflag, size = 0x1c, scoped, tag = 'scratch operand']
  #allocation3 [shape = 's32[]', space=sflag, size = 0x4, offset = 0, fixed_abs, tag = 'sflag constant byte address 0x0 - dummy sync flag']
  #allocation4 [shape = 's32[]', space=sflag, size = 0x4, offset = 0, fixed_abs, tag = 'sflag constant byte address 0x0 - dummy sync flag']
  #allocation5 [shape = 's32[]', space=sflag, size = 0x4, offset = 0, fixed_abs, tag = 'sflag constant byte address 0x0 - dummy sync flag']
  #allocation6 [shape = 's32[]', space=sflag, size = 0x4, offset = 0, fixed_abs, tag = 'sflag constant byte address 0x0 - dummy sync flag']
  #allocation7 [shape = 's32[]', space=sflag, size = 0x4, offset = 0, fixed_abs, tag = 'sflag constant byte address 0x0 - dummy sync flag']
  #allocation8 [shape = 's32[]', space=sflag, size = 0x4, offset = 0, fixed_abs, tag = 'sflag constant byte address 0x0 - dummy sync flag']
  #allocation9 [shape = 's32[]', space=sflag, size = 0x4, offset = 0, fixed_abs, tag = 'sflag constant byte address 0x0 - dummy sync flag']
  #allocation10 [shape = 's32[]', space=sflag, size = 0x4, offset = 0, fixed_abs, tag = 'sflag constant byte address 0x0 - dummy sync flag']
  #allocation11 [shape = 's32[]', space=sflag, size = 0x4, offset = 0, fixed_abs, tag = 'sflag constant byte address 0x0 - dummy sync flag']
  #allocation12 [shape = 's32[]', space=sflag, size = 0x4, offset = 0, fixed_abs, tag = 'sflag constant byte address 0x0 - dummy sync flag']
  #allocation13 [shape = 's32[]', space=sflag, size = 0x4, offset = 0, fixed_abs, tag = 'sflag constant byte address 0x0 - dummy sync flag']
  #allocation14 [shape = 's32[]', space=sflag, size = 0x4, offset = 0, fixed_abs, tag = 'sflag constant byte address 0x0 - dummy sync flag']
  #allocation15 [shape = 's32[]', space=sflag, size = 0x4, offset = 0, fixed_abs, tag = 'sflag constant byte address 0x0 - dummy sync flag']
  %s0 = inlined_call_operand.hbm [shape: f32[4,64,128], index: 0, kind: input, shape index: {}]
  %s1 = inlined_call_operand.vmem [shape: f32[4,24,128], index: 1, kind: output, shape index: {}]
  %s2 = sld [smem:[#allocation0]]
  $region17: #{fn.1} parent=0
    _
  %s4 = ssub.s32 1, %s2
  %s5 = scalar_select 0, %s4, %s2
  loop: start=0, step=1, limit=2
  $region2: #{fn.1} parent=0 // loop_pre_header
    _
  $region3: #{fn.1} parent=0 // loop_header
    %s7 = sphi 0, %s11
    %p8 = scmp.ge.s32.totalorder %s7, 2
  $region4: #{fn.1} parent=0 // loop_header_branch
    %10 = sbr.rel (%p8) target = $region8
  $region5: #{fn.1} parent=0 // loop_body
    %s12 = sadd.s32 %s7, 1
    %p13 = scmp.eq.s32.totalorder %s7, 0
    // Predicated region
    $region9: #{fn.1} parent=5 // pred_check
      %p14 = pneg %p13
    $region10: #{fn.1} parent=5 // pred_check_branch
      %16 = sbr.rel (%p14) target = $region12
    $region11: #{fn.1} parent=5 // pred_region
      %s18 = sshll.u32 %s1, 4
      %s19 = int_to_ptr.vmem [resolvable:$true] %s18
      %21 = dma.hbm_to_vmem [thread:$0]  %s0, 256, %s19, [#allocation2], 1024, 384, 4
      %s22 = scalar_lea.hbm %s0, 640
      %s23 = scalar_lea.vmem %s1, 9
      %s24 = scalar_lea.sflag [#allocation2], 1
      %s26 = sshll.u32 %s23, 4
      %s27 = int_to_ptr.vmem [resolvable:$true] %s26
      %29 = dma.hbm_to_vmem [thread:$0]  %s22, 64, %s27, %s24, 1024, 384, 1
      %s30 = scalar_lea.hbm %s0, 1008
      %s31 = scalar_lea.vmem %s1, 10
      %s32 = scalar_lea.sflag [#allocation2], 2
      %s34 = sshll.u32 %s31, 4
      %s35 = int_to_ptr.vmem [resolvable:$true] %s34
      %37 = dma.hbm_to_vmem [thread:$0]  %s30, 64, %s35, %s32, 1024, 384, 1
      %s38 = scalar_lea.hbm %s0, 80
      %s39 = scalar_lea.vmem %s1, 13
      %s40 = scalar_lea.sflag [#allocation2], 3
      %s42 = sshll.u32 %s39, 4
      %s43 = int_to_ptr.vmem [resolvable:$true] %s42
      %45 = dma.hbm_to_vmem [thread:$0]  %s38, 64, %s43, %s40, 1024, 384, 1
      %s46 = scalar_lea.hbm %s0, 800
      %s47 = scalar_lea.vmem %s1, 14
      %s48 = scalar_lea.sflag [#allocation2], 4
      %s50 = sshll.u32 %s47, 4
      %s51 = int_to_ptr.vmem [resolvable:$true] %s50
      %53 = dma.hbm_to_vmem [thread:$0]  %s46, 256, %s51, %s48, 1024, 384, 4
      %s54 = scalar_lea.hbm %s0, 400
      %s55 = scalar_lea.vmem %s1, 22
      %s56 = scalar_lea.sflag [#allocation2], 5
      %s58 = sshll.u32 %s55, 4
      %s59 = int_to_ptr.vmem [resolvable:$true] %s58
      %61 = dma.hbm_to_vmem [thread:$0]  %s54, 128, %s59, %s56, 1024, 384, 2
      %s62 = smul.u32 4, 4
      %s63 = smul.u32 %s62, 1
      %s64 = sshll.u32 %s63, 4
      %65 = dma.done [#allocation2], %s64
      %s66 = smul.u32 4, 1
      %s67 = smul.u32 %s66, 1
      %s68 = sshll.u32 %s67, 4
      %69 = dma.done %s24, %s68
      %s70 = sshll.u32 %s67, 4
      %71 = dma.done %s32, %s70
      %s72 = sshll.u32 %s67, 4
      %73 = dma.done %s40, %s72
      %s74 = sshll.u32 %s63, 4
      %75 = dma.done %s48, %s74
      %s76 = smul.u32 4, 2
      %s77 = smul.u32 %s76, 1
      %s78 = sshll.u32 %s77, 4
      %79 = dma.done %s56, %s78
    $region12: #{fn.1} parent=5 // pred_fallthru
      _
    %p80 = scmp.eq.s32.totalorder %s7, 1
    // Predicated region
    $region13: #{fn.1} parent=5 // pred_check
      %p81 = pneg %p80
    $region14: #{fn.1} parent=5 // pred_check_branch
      %83 = sbr.rel (%p81) target = $region16
    $region15: #{fn.1} parent=5 // pred_region
      %s84 = scalar_lea.hbm %s0, 160
      %s85 = scalar_lea.vmem %s1, 4
      %s87 = sshll.u32 %s85, 4
      %s88 = int_to_ptr.vmem [resolvable:$true] %s87
      %90 = dma.hbm_to_vmem [thread:$0]  %s84, 64, %s88, [#allocation2], 1024, 384, 1
      %s91 = scalar_lea.hbm %s0, 192
      %s92 = scalar_lea.vmem %s1, 5
      %s93 = scalar_lea.sflag [#allocation2], 1
      %s95 = sshll.u32 %s92, 4
      %s96 = int_to_ptr.vmem [resolvable:$true] %s95
      %98 = dma.hbm_to_vmem [thread:$0]  %s91, 64, %s96, %s93, 1024, 384, 1
      %s99 = scalar_lea.hbm %s0, 320
      %s100 = scalar_lea.vmem %s1, 6
      %s101 = scalar_lea.sflag [#allocation2], 2
      %s103 = sshll.u32 %s100, 4
      %s104 = int_to_ptr.vmem [resolvable:$true] %s103
      %106 = dma.hbm_to_vmem [thread:$0]  %s99, 192, %s104, %s101, 1024, 384, 3
      %s107 = scalar_lea.hbm %s0, 528
      %s108 = scalar_lea.vmem %s1, 11
      %s109 = scalar_lea.sflag [#allocation2], 3
      %s111 = sshll.u32 %s108, 4
      %s112 = int_to_ptr.vmem [resolvable:$true] %s111
      %114 = dma.hbm_to_vmem [thread:$0]  %s107, 128, %s112, %s109, 1024, 384, 2
      %s115 = scalar_lea.hbm %s0, 128
      %s116 = scalar_lea.vmem %s1, 18
      %s117 = scalar_lea.sflag [#allocation2], 4
      %s119 = sshll.u32 %s116, 4
      %s120 = int_to_ptr.vmem [resolvable:$true] %s119
      %122 = dma.hbm_to_vmem [thread:$0]  %s115, 64, %s120, %s117, 1024, 384, 1
      %s123 = scalar_lea.hbm %s0, 960
      %s124 = scalar_lea.vmem %s1, 19
      %s125 = scalar_lea.sflag [#allocation2], 5
      %s127 = sshll.u32 %s124, 4
      %s128 = int_to_ptr.vmem [resolvable:$true] %s127
      %130 = dma.hbm_to_vmem [thread:$0]  %s123, 128, %s128, %s125, 1024, 384, 2
      %s131 = scalar_lea.hbm %s0, 272
      %s132 = scalar_lea.vmem %s1, 21
      %s133 = scalar_lea.sflag [#allocation2], 6
      %s135 = sshll.u32 %s132, 4
      %s136 = int_to_ptr.vmem [resolvable:$true] %s135
      %138 = dma.hbm_to_vmem [thread:$0]  %s131, 64, %s136, %s133, 1024, 384, 1
      %s139 = smul.u32 4, 1
      %s140 = smul.u32 %s139, 1
      %s141 = sshll.u32 %s140, 4
      %142 = dma.done [#allocation2], %s141
      %s143 = sshll.u32 %s140, 4
      %144 = dma.done %s93, %s143
      %s145 = smul.u32 4, 3
      %s146 = smul.u32 %s145, 1
      %s147 = sshll.u32 %s146, 4
      %148 = dma.done %s101, %s147
      %s149 = smul.u32 4, 2
      %s150 = smul.u32 %s149, 1
      %s151 = sshll.u32 %s150, 4
      %152 = dma.done %s109, %s151
      %s153 = sshll.u32 %s140, 4
      %154 = dma.done %s117, %s153
      %s155 = sshll.u32 %s150, 4
      %156 = dma.done %s125, %s155
      %s157 = sshll.u32 %s140, 4
      %158 = dma.done %s133, %s157
    $region16: #{fn.1} parent=5 // pred_fallthru
      _
  $region6: #{fn.1} parent=0 // loop_footer
    %s11 = sadd.s32 1, %s7
  $region7: #{fn.1} parent=0 // loop_footer_branch
    %6 = sbr.rel target = $region3
  $region8: #{fn.1} parent=0 // loop_exit
    _
  %159 = vsyncmov [#allocation2]
  %s160 = vpop.sfrf %159
  %p161 = scmp.eq.s32.totalorder %s160, 0
  %p162 = pneg %p161
  %164 = shalt.err (%p162)
  %s165 = scalar_lea.sflag [#allocation2], 1
  %166 = vsyncmov %s165
  %s167 = vpop.sfrf %166
  %p168 = scmp.eq.s32.totalorder %s167, 0
  %p169 = pneg %p168
  %171 = shalt.err (%p169)
  %s172 = scalar_lea.sflag [#allocation2], 2
  %173 = vsyncmov %s172
  %s174 = vpop.sfrf %173
  %p175 = scmp.eq.s32.totalorder %s174, 0
  %p176 = pneg %p175
  %178 = shalt.err (%p176)
  %s179 = scalar_lea.sflag [#allocation2], 3
  %180 = vsyncmov %s179
  %s181 = vpop.sfrf %180
  %p182 = scmp.eq.s32.totalorder %s181, 0
  %p183 = pneg %p182
  %185 = shalt.err (%p183)
  %s186 = scalar_lea.sflag [#allocation2], 4
  %187 = vsyncmov %s186
  %s188 = vpop.sfrf %187
  %p189 = scmp.eq.s32.totalorder %s188, 0
  %p190 = pneg %p189
  %192 = shalt.err (%p190)
  %s193 = scalar_lea.sflag [#allocation2], 5
  %194 = vsyncmov %s193
  %s195 = vpop.sfrf %194
  %p196 = scmp.eq.s32.totalorder %s195, 0
  %p197 = pneg %p196
  %199 = shalt.err (%p197)
  %s200 = scalar_lea.sflag [#allocation2], 6
  %201 = vsyncmov %s200
  %s202 = vpop.sfrf %201
  %p203 = scmp.eq.s32.totalorder %s202, 0
  %p204 = pneg %p203
  %206 = shalt.err (%p204)

</llo_original>
